<compile_context>
chip_gen: v7x
topology: tpu7x:2x2x1
jax: 0.10.0
libtpu: 0.0.40
codegen_flags: <defaults>
</compile_context>

<pallas_src>
import functools

import jax
import jax.numpy as jnp
from jax import lax
from jax.experimental import pallas as pl
from jax.experimental.pallas import tpu as pltpu


# ----------------------------- Pallas kernel -----------------------------

def _attention_kernel(x_ref, wq_ref, wk_ref, wv_ref, wo_ref, bout_ref,
                      o_ref, acc_ref, *, scale, heads_per_group):
    """One (batch, head-group) element per grid step; everything in VMEM.

    x_ref:    (N, DIM)      bf16 input block (batch dim squeezed)
    wq_ref:   (Hg, DIM, D)  bf16 per-head query weights (head-group block)
    wk_ref:   (Hg, DIM, D)  bf16 per-head key weights
    wv_ref:   (Hg, DIM, D)  bf16 per-head value weights
    wo_ref:   (Hg, D, DIM)  bf16 per-head slice of the output projection
    bout_ref: (1, DIM)      f32  output bias
    o_ref:    (N, DIM)      output block (full result or per-group partial)
    acc_ref:  (N, DIM)      f32  VMEM accumulator scratch
    """
    x = x_ref[...]                                     # (N, DIM) bf16
    acc_ref[...] = jnp.zeros_like(acc_ref)

    def head_body(h, carry):
        # Per-head projections: bf16 operands on the MXU, f32 accumulation.
        q = jnp.dot(x, wq_ref[h], preferred_element_type=jnp.float32)  # (N, D)
        k = jnp.dot(x, wk_ref[h], preferred_element_type=jnp.float32)
        v = jnp.dot(x, wv_ref[h], preferred_element_type=jnp.float32)

        # Fold the softmax scale into q (N*D multiplies, not N*N), then feed
        # bf16 operands back into the MXU.
        q = (q * scale).astype(jnp.bfloat16)
        k = k.astype(jnp.bfloat16)
        v = v.astype(jnp.bfloat16)

        # scores = q @ k^T via dot_general contracting on D (no transpose copy)
        s = lax.dot_general(q, k, (((1,), (1,)), ((), ())),
                            preferred_element_type=jnp.float32)        # (N, N)

        # Softmax kept in f32 (v5e-safe). The denominator is folded into the
        # post-matmul scale instead of rescaling the (N, N) probabilities.
        m = jnp.max(s, axis=-1, keepdims=True)
        p = jnp.exp(s - m)
        inv = pl.reciprocal(jnp.sum(p, axis=-1, keepdims=True), approx=True)
        ctx = jnp.dot(p.astype(jnp.bfloat16), v,
                      preferred_element_type=jnp.float32) * inv         # (N, D)

        # This head's slice of the output projection, accumulated in f32
        # (lane-dense (N, DIM) store; no 'n (h d)' slab writes).
        acc_ref[...] += jnp.dot(ctx.astype(jnp.bfloat16), wo_ref[h],
                                preferred_element_type=jnp.float32)     # (N, DIM)
        return carry

    lax.fori_loop(0, heads_per_group, head_body, 0)

    # Bias is added exactly once (head-group 0); other groups emit partials
    # that the wrapper sums.
    @pl.when(pl.program_id(1) == 0)
    def _():
        o_ref[...] = (acc_ref[...] + bout_ref[...]).astype(o_ref.dtype)

    @pl.when(pl.program_id(1) > 0)
    def _():
        o_ref[...] = acc_ref[...].astype(o_ref.dtype)


# ------------------------------ Host wrapper ------------------------------

def attention_forward(x, params, *, heads, dim_head, head_groups=None,
                      mask=None):
    """x: (B, N, DIM) -> (B, N, DIM). Single fused pallas_call, grid (B, G)."""
    # TODO(synk): boolean attention-mask path not implemented.
    assert mask is None, "mask path not implemented in the Pallas kernel"

    B, N, DIM = x.shape
    inner = heads * dim_head
    scale = float(dim_head) ** -0.5

    if head_groups is None:
        # A second parallel grid axis mainly helps v7x (2 TCs/chip) when the
        # batch axis alone cannot keep both cores busy.
        head_groups = 2 if (B % 2 == 1 and heads % 2 == 0) else 1
    assert heads % head_groups == 0, "heads must divide evenly into groups"
    G = head_groups
    hg = heads // G

    # ---- One-time host-side parameter reshapes / casts (XLA, not kernel) ----
    w_qkv = params["w_qkv"]                    # (DIM, 3*inner) == Wqkv^T
    w_out = params["w_out"]                    # (inner, DIM)   == Wout^T
    b_out = params["b_out"].reshape(1, DIM).astype(jnp.float32)

    wq, wk, wv = jnp.split(w_qkv, 3, axis=-1)  # each (DIM, inner)

    def per_head(w):                           # (DIM, H*D) -> (H, DIM, D) bf16
        return (w.reshape(DIM, heads, dim_head)
                 .transpose(1, 0, 2).astype(jnp.bfloat16))

    wq, wk, wv = per_head(wq), per_head(wk), per_head(wv)
    wo = w_out.reshape(heads, dim_head, DIM).astype(jnp.bfloat16)  # (H, D, DIM)
    x_bf = x.astype(jnp.bfloat16)

    # ---- Output layout: full result for G == 1, per-group partials otherwise.
    if G == 1:
        out_shape = jax.ShapeDtypeStruct((B, N, DIM), x.dtype)
        out_spec = pl.BlockSpec((None, N, DIM), lambda b, g: (b, 0, 0))
    else:
        out_shape = jax.ShapeDtypeStruct((G, B, N, DIM), jnp.float32)
        out_spec = pl.BlockSpec((None, None, N, DIM), lambda b, g: (g, b, 0, 0))

    # ---- Explicit VMEM budget (v5e default scoped limit is only 16 MiB). ----
    vmem_est = (
        2 * (N * DIM * 2)                         # x block (double-buffered, bf16)
        + 2 * (N * DIM * 4)                       # out block (double-buffered)
        + 2 * (3 * hg * DIM * dim_head * 2        # wq/wk/wv blocks (bf16)
               + hg * dim_head * DIM * 2          # wo block (bf16)
               + DIM * 4)                         # bias
        + N * DIM * 4                             # f32 accumulator scratch
        + 3 * N * N * 4                           # live f32 scores/probs temps
        + 8 * N * dim_head * 4                    # q/k/v/ctx temporaries
    )
    vmem_limit = int(min(max(2 * vmem_est, 8 << 20), 64 << 20))

    # ---- Advisory cost estimate for the XLA scheduler. ----
    flops = int(2 * B * N * DIM * 3 * inner          # qkv projection
                + 4 * B * heads * N * N * dim_head   # scores + context
                + 2 * B * N * inner * DIM)           # output projection
    transcendentals = int(B * heads * N * N)         # softmax exp
    bytes_accessed = int(2 * x.size + 2 * (w_qkv.size + w_out.size)
                         + 4 * b_out.size + 4 * G * B * N * DIM)

    kernel = functools.partial(_attention_kernel, scale=scale,
                               heads_per_group=hg)

    result = pl.pallas_call(
        kernel,
        out_shape=out_shape,
        grid_spec=pltpu.PrefetchScalarGridSpec(
            num_scalar_prefetch=0,
            grid=(B, G),
            in_specs=[
                # activations: one batch element per step
                pl.BlockSpec((None, N, DIM), lambda b, g: (b, 0, 0)),
                # per-head weights: blocked along the leading head axis by
                # head group; constant along the batch axis -> VMEM resident
                pl.BlockSpec((hg, DIM, dim_head), lambda b, g: (g, 0, 0)),
                pl.BlockSpec((hg, DIM, dim_head), lambda b, g: (g, 0, 0)),
                pl.BlockSpec((hg, DIM, dim_head), lambda b, g: (g, 0, 0)),
                pl.BlockSpec((hg, dim_head, DIM), lambda b, g: (g, 0, 0)),
                pl.BlockSpec((1, DIM), lambda b, g: (0, 0)),
            ],
            out_specs=out_spec,
            scratch_shapes=[pltpu.VMEM((N, DIM), jnp.float32)],
        ),
        compiler_params=pltpu.CompilerParams(
            dimension_semantics=("parallel", "parallel"),
            vmem_limit_bytes=vmem_limit,
        ),
        cost_estimate=pl.CostEstimate(
            flops=flops,
            transcendentals=transcendentals,
            bytes_accessed=bytes_accessed,
        ),
    )(x_bf, wq, wk, wv, wo, b_out)

    if G == 1:
        return result
    # Sum head-group partials (bias was added only in group 0).
    return result.sum(axis=0).astype(x.dtype)


# ------------------------------ Reference (JAX) ------------------------------

def attention_reference(x, params, *, heads, dim_head):
    B, N, DIM = x.shape
    inner_dim = heads * dim_head
    scale = float(dim_head) ** -0.5
    qkv = x @ params["w_qkv"]
    q, k, v = jnp.split(qkv, 3, axis=-1)
    to_heads = lambda t: t.reshape(B, N, heads, dim_head).transpose(0, 2, 1, 3)
    q, k, v = map(to_heads, (q, k, v))
    dots = jnp.einsum("bhid,bhjd->bhij", q, k) * scale
    attn = jax.nn.softmax(dots, axis=-1)
    out = jnp.einsum("bhij,bhjd->bhid", attn, v)
    out = out.transpose(0, 2, 1, 3).reshape(B, N, inner_dim)
    return out @ params["w_out"] + params["b_out"]


# ----------------------------------- Main -----------------------------------

if __name__ == "__main__":
    # Small shapes consistent with the module.
    B, N, DIM = 2, 8, 32
    HEADS, DIM_HEAD = 4, 16
    INNER = HEADS * DIM_HEAD  # 64

    key = jax.random.PRNGKey(0)
    k_x, k_qkv, k_out, k_b = jax.random.split(key, 4)

    x = jax.random.normal(k_x, (B, N, DIM), dtype=jnp.float32)

    # Parameters stored transposed (x @ W) relative to nn.Linear's weight.
    params = {
        # to_qkv: Linear(dim, inner_dim*3, bias=False) -> W^T: (DIM, 3*INNER)
        "w_qkv": jax.random.normal(k_qkv, (DIM, 3 * INNER), jnp.float32) * 0.05,
        # to_out[0]: Linear(inner_dim, dim) -> W^T: (INNER, DIM), bias: (DIM,)
        "w_out": jax.random.normal(k_out, (INNER, DIM), jnp.float32) * 0.05,
        "b_out": jax.random.normal(k_b, (DIM,), jnp.float32) * 0.05,
    }

    ref = attention_reference(x, params, heads=HEADS, dim_head=DIM_HEAD)

    # Exercise both the single-group path (parallel over batch only) and the
    # two-head-group path (v7x-style second parallel axis + partial-sum).
    for groups in (1, 2):
        out = attention_forward(x, params, heads=HEADS, dim_head=DIM_HEAD,
                                head_groups=groups)
        out = jax.block_until_ready(out)
        assert out.shape == (B, N, DIM), out.shape
        # bf16 MXU operands (with f32 accumulation) plus the approximate EUP
        # reciprocal in the softmax normalization -> loosened tolerance vs
        # the all-f32 reference.
        assert jnp.allclose(out, ref, atol=2e-2, rtol=2e-2), (
            f"mismatch vs reference (head_groups={groups}): "
            f"max abs err {jnp.max(jnp.abs(out - ref))}")

    print("KERNEL_OK")
</pallas_src>

<mosaic_0001>
module attributes {stable_mosaic.version = 11 : i64} {
  func.func @_attention_kernel(%arg0: i32, %arg1: i32, %arg2: memref<1x8x32xbf16, #tpu.memory_space<vmem>>, %arg3: memref<4x32x16xbf16, #tpu.memory_space<vmem>>, %arg4: memref<4x32x16xbf16, #tpu.memory_space<vmem>>, %arg5: memref<4x32x16xbf16, #tpu.memory_space<vmem>>, %arg6: memref<4x16x32xbf16, #tpu.memory_space<vmem>>, %arg7: memref<1x32xf32, #tpu.memory_space<vmem>>, %arg8: memref<1x8x32xf32, #tpu.memory_space<vmem>>, %arg9: memref<8x32xf32, #tpu.memory_space<vmem>>) attributes {dimension_semantics = [#tpu.dimension_semantics<parallel>, #tpu.dimension_semantics<parallel>], iteration_bounds = array<i64: 2, 1>, scalar_prefetch = 0 : i64, scratch_operands = 1 : i64, tpu.core_type = #tpu.core_type<tc>, window_params = [{transform_indices = @transform_0, window_bounds = array<i64: 1, 8, 32>}, {transform_indices = @transform_1, window_bounds = array<i64: 4, 32, 16>}, {transform_indices = @transform_2, window_bounds = array<i64: 4, 32, 16>}, {transform_indices = @transform_3, window_bounds = array<i64: 4, 32, 16>}, {transform_indices = @transform_4, window_bounds = array<i64: 4, 16, 32>}, {pipeline_mode = #tpu.pipeline_mode<synchronous>, transform_indices = @transform_5, window_bounds = array<i64: 1, 32>}, {transform_indices = @transform_6, window_bounds = array<i64: 1, 8, 32>}]} {
    %c0 = arith.constant 0 : index
    %c0_0 = arith.constant 0 : index
    %c0_1 = arith.constant 0 : index
    %0 = vector.load %arg2[%c0, %c0_0, %c0_1] : memref<1x8x32xbf16, #tpu.memory_space<vmem>>, vector<1x8x32xbf16>
    %1 = vector.shape_cast %0 : vector<1x8x32xbf16> to vector<8x32xbf16>
    %cst = arith.constant 0.000000e+00 : f32
    %2 = vector.broadcast %cst : f32 to vector<8x32xf32>
    %c0_2 = arith.constant 0 : index
    %c0_3 = arith.constant 0 : index
    %3 = vector.load %arg9[%c0_2, %c0_3] : memref<8x32xf32, #tpu.memory_space<vmem>>, vector<8x32xf32>
    tpu.vector_store %arg9[%c0_2, %c0_3], %2 {strides = array<i32>} : memref<8x32xf32, #tpu.memory_space<vmem>>, vector<8x32xf32>,
    %c0_i32 = arith.constant 0 : i32
    %c4_i32 = arith.constant 4 : i32
    %4 = arith.addi %c0_i32, %c4_i32 : i32
    %c1_i32 = arith.constant 1 : i32
    scf.for %arg10 = %c0_i32 to %4 step %c1_i32  : i32 {
      %11 = arith.index_cast %arg10 : i32 to index
      %c0_9 = arith.constant 0 : index
      %c0_10 = arith.constant 0 : index
      %12 = vector.load %arg3[%11, %c0_9, %c0_10] : memref<4x32x16xbf16, #tpu.memory_space<vmem>>, vector<1x32x16xbf16>
      %13 = vector.shape_cast %12 : vector<1x32x16xbf16> to vector<32x16xbf16>
      %cst_11 = arith.constant dense<0.000000e+00> : vector<8x16xf32>
      %14 = tpu.matmul %1, %13, %cst_11 {dimension_numbers = #tpu.dot_dimension_numbers<[1], [0], [0], [1], [0, 0, 1, 1], [], []>} : vector<8x32xbf16>, vector<32x16xbf16>, vector<8x16xf32> -> vector<8x16xf32>
      %15 = arith.index_cast %arg10 : i32 to index
      %c0_12 = arith.constant 0 : index
      %c0_13 = arith.constant 0 : index
      %16 = vector.load %arg4[%15, %c0_12, %c0_13] : memref<4x32x16xbf16, #tpu.memory_space<vmem>>, vector<1x32x16xbf16>
      %17 = vector.shape_cast %16 : vector<1x32x16xbf16> to vector<32x16xbf16>
      %cst_14 = arith.constant dense<0.000000e+00> : vector<8x16xf32>
      %18 = tpu.matmul %1, %17, %cst_14 {dimension_numbers = #tpu.dot_dimension_numbers<[1], [0], [0], [1], [0, 0, 1, 1], [], []>} : vector<8x32xbf16>, vector<32x16xbf16>, vector<8x16xf32> -> vector<8x16xf32>
      %19 = arith.index_cast %arg10 : i32 to index
      %c0_15 = arith.constant 0 : index
      %c0_16 = arith.constant 0 : index
      %20 = vector.load %arg5[%19, %c0_15, %c0_16] : memref<4x32x16xbf16, #tpu.memory_space<vmem>>, vector<1x32x16xbf16>
      %21 = vector.shape_cast %20 : vector<1x32x16xbf16> to vector<32x16xbf16>
      %cst_17 = arith.constant dense<0.000000e+00> : vector<8x16xf32>
      %22 = tpu.matmul %1, %21, %cst_17 {dimension_numbers = #tpu.dot_dimension_numbers<[1], [0], [0], [1], [0, 0, 1, 1], [], []>} : vector<8x32xbf16>, vector<32x16xbf16>, vector<8x16xf32> -> vector<8x16xf32>
      %cst_18 = arith.constant 2.500000e-01 : f32
      %23 = vector.broadcast %cst_18 : f32 to vector<8x16xf32>
      %24 = arith.mulf %14, %23 : vector<8x16xf32>
      %25 = arith.truncf %24 : vector<8x16xf32> to vector<8x16xbf16>
      %26 = arith.truncf %18 : vector<8x16xf32> to vector<8x16xbf16>
      %27 = arith.truncf %22 : vector<8x16xf32> to vector<8x16xbf16>
      %cst_19 = arith.constant dense<0.000000e+00> : vector<8x8xf32>
      %28 = tpu.matmul %25, %26, %cst_19 {dimension_numbers = #tpu.dot_dimension_numbers<[1], [1], [0], [0], [0, 0, 1, 0], [], []>} : vector<8x16xbf16>, vector<8x16xbf16>, vector<8x8xf32> -> vector<8x8xf32>
      %cst_20 = arith.constant dense<0xFF800000> : vector<8xf32>
      %29 = vector.multi_reduction <maximumf>, %28, %cst_20 [1] : vector<8x8xf32> to vector<8xf32>
      %30 = vector.shape_cast %29 : vector<8xf32> to vector<8x1xf32>
      %31 = vector.broadcast %30 : vector<8x1xf32> to vector<8x8xf32>
      %32 = arith.subf %28, %31 : vector<8x8xf32>
      %33 = math.exp %32 : vector<8x8xf32>
      %cst_21 = arith.constant dense<0.000000e+00> : vector<8xf32>
      %34 = vector.multi_reduction <add>, %33, %cst_21 [1] : vector<8x8xf32> to vector<8xf32>
      %35 = vector.shape_cast %34 : vector<8xf32> to vector<8x1xf32>
      %36 = tpu.reciprocal %35 {approx = true} : vector<8x1xf32> -> vector<8x1xf32>
      %37 = arith.truncf %33 : vector<8x8xf32> to vector<8x8xbf16>
      %cst_22 = arith.constant dense<0.000000e+00> : vector<8x16xf32>
      %38 = tpu.matmul %37, %27, %cst_22 {dimension_numbers = #tpu.dot_dimension_numbers<[1], [0], [0], [1], [0, 0, 1, 1], [], []>} : vector<8x8xbf16>, vector<8x16xbf16>, vector<8x16xf32> -> vector<8x16xf32>
      %39 = vector.broadcast %36 : vector<8x1xf32> to vector<8x16xf32>
      %40 = arith.mulf %38, %39 : vector<8x16xf32>
      %c0_23 = arith.constant 0 : index
      %c0_24 = arith.constant 0 : index
      %41 = vector.load %arg9[%c0_23, %c0_24] : memref<8x32xf32, #tpu.memory_space<vmem>>, vector<8x32xf32>
      %42 = arith.truncf %40 : vector<8x16xf32> to vector<8x16xbf16>
      %43 = arith.index_cast %arg10 : i32 to index
      %c0_25 = arith.constant 0 : index
      %c0_26 = arith.constant 0 : index
      %44 = vector.load %arg6[%43, %c0_25, %c0_26] : memref<4x16x32xbf16, #tpu.memory_space<vmem>>, vector<1x16x32xbf16>
      %45 = vector.shape_cast %44 : vector<1x16x32xbf16> to vector<16x32xbf16>
      %cst_27 = arith.constant dense<0.000000e+00> : vector<8x32xf32>
      %46 = tpu.matmul %42, %45, %cst_27 {dimension_numbers = #tpu.dot_dimension_numbers<[1], [0], [0], [1], [0, 0, 1, 1], [], []>} : vector<8x16xbf16>, vector<16x32xbf16>, vector<8x32xf32> -> vector<8x32xf32>
      %47 = arith.addf %41, %46 : vector<8x32xf32>
      %c0_28 = arith.constant 0 : index
      %c0_29 = arith.constant 0 : index
      %48 = vector.load %arg9[%c0_28, %c0_29] : memref<8x32xf32, #tpu.memory_space<vmem>>, vector<8x32xf32>
      tpu.vector_store %arg9[%c0_28, %c0_29], %47 {strides = array<i32>} : memref<8x32xf32, #tpu.memory_space<vmem>>, vector<8x32xf32>,
    }
    %c4_i32_4 = arith.constant 4 : i32
    %c0_i32_5 = arith.constant 0 : i32
    %5 = arith.cmpi eq, %arg1, %c0_i32_5 : i32
    %6 = arith.extui %5 : i1 to i32
    %c0_i32_6 = arith.constant 0 : i32
    %7 = arith.cmpi ne, %6, %c0_i32_6 : i32
    scf.if %7 {
      %c0_9 = arith.constant 0 : index
      %c0_10 = arith.constant 0 : index
      %11 = vector.load %arg9[%c0_9, %c0_10] : memref<8x32xf32, #tpu.memory_space<vmem>>, vector<8x32xf32>
      %c0_11 = arith.constant 0 : index
      %c0_12 = arith.constant 0 : index
      %12 = vector.load %arg7[%c0_11, %c0_12] : memref<1x32xf32, #tpu.memory_space<vmem>>, vector<1x32xf32>
      %13 = vector.broadcast %12 : vector<1x32xf32> to vector<8x32xf32>
      %14 = arith.addf %11, %13 : vector<8x32xf32>
      %c0_13 = arith.constant 0 : index
      %c0_14 = arith.constant 0 : index
      %c0_15 = arith.constant 0 : index
      %15 = vector.load %arg8[%c0_13, %c0_14, %c0_15] : memref<1x8x32xf32, #tpu.memory_space<vmem>>, vector<1x8x32xf32>
      %16 = vector.shape_cast %15 : vector<1x8x32xf32> to vector<8x32xf32>
      %17 = vector.shape_cast %14 : vector<8x32xf32> to vector<1x8x32xf32>
      tpu.vector_store %arg8[%c0_13, %c0_14, %c0_15], %17 {strides = array<i32>} : memref<1x8x32xf32, #tpu.memory_space<vmem>>, vector<1x8x32xf32>,
    } else {
    }
    %c0_i32_7 = arith.constant 0 : i32
    %8 = arith.cmpi sgt, %arg1, %c0_i32_7 : i32
    %9 = arith.extui %8 : i1 to i32
    %c0_i32_8 = arith.constant 0 : i32
    %10 = arith.cmpi ne, %9, %c0_i32_8 : i32
    scf.if %10 {
      %c0_9 = arith.constant 0 : index
      %c0_10 = arith.constant 0 : index
      %11 = vector.load %arg9[%c0_9, %c0_10] : memref<8x32xf32, #tpu.memory_space<vmem>>, vector<8x32xf32>
      %c0_11 = arith.constant 0 : index
      %c0_12 = arith.constant 0 : index
      %c0_13 = arith.constant 0 : index
      %12 = vector.load %arg8[%c0_11, %c0_12, %c0_13] : memref<1x8x32xf32, #tpu.memory_space<vmem>>, vector<1x8x32xf32>
      %13 = vector.shape_cast %12 : vector<1x8x32xf32> to vector<8x32xf32>
      %14 = vector.shape_cast %11 : vector<8x32xf32> to vector<1x8x32xf32>
      tpu.vector_store %arg8[%c0_11, %c0_12, %c0_13], %14 {strides = array<i32>} : memref<1x8x32xf32, #tpu.memory_space<vmem>>, vector<1x8x32xf32>,
    } else {
    }
    return
  }
  func.func @transform_0(%arg0: i32, %arg1: i32) -> (i32, i32, i32) {
    %c0_i32 = arith.constant 0 : i32
    %c0_i32_0 = arith.constant 0 : i32
    %c0_i32_1 = arith.constant 0 : i32
    return %arg0, %c0_i32, %c0_i32_0 : i32, i32, i32
  }
  func.func @transform_1(%arg0: i32, %arg1: i32) -> (i32, i32, i32) {
    %c0_i32 = arith.constant 0 : i32
    %c0_i32_0 = arith.constant 0 : i32
    %c0_i32_1 = arith.constant 0 : i32
    return %arg1, %c0_i32, %c0_i32_0 : i32, i32, i32
  }
  func.func @transform_2(%arg0: i32, %arg1: i32) -> (i32, i32, i32) {
    %c0_i32 = arith.constant 0 : i32
    %c0_i32_0 = arith.constant 0 : i32
    %c0_i32_1 = arith.constant 0 : i32
    return %arg1, %c0_i32, %c0_i32_0 : i32, i32, i32
  }
  func.func @transform_3(%arg0: i32, %arg1: i32) -> (i32, i32, i32) {
    %c0_i32 = arith.constant 0 : i32
    %c0_i32_0 = arith.constant 0 : i32
    %c0_i32_1 = arith.constant 0 : i32
    return %arg1, %c0_i32, %c0_i32_0 : i32, i32, i32
  }
  func.func @transform_4(%arg0: i32, %arg1: i32) -> (i32, i32, i32) {
    %c0_i32 = arith.constant 0 : i32
    %c0_i32_0 = arith.constant 0 : i32
    %c0_i32_1 = arith.constant 0 : i32
    return %arg1, %c0_i32, %c0_i32_0 : i32, i32, i32
  }
  func.func @transform_5(%arg0: i32, %arg1: i32) -> (i32, i32) {
    %c0_i32 = arith.constant 0 : i32
    %c0_i32_0 = arith.constant 0 : i32
    %c0_i32_1 = arith.constant 0 : i32
    return %c0_i32, %c0_i32_0 : i32, i32
  }
  func.func @transform_6(%arg0: i32, %arg1: i32) -> (i32, i32, i32) {
    %c0_i32 = arith.constant 0 : i32
    %c0_i32_0 = arith.constant 0 : i32
    %c0_i32_1 = arith.constant 0 : i32
    return %arg0, %c0_i32, %c0_i32_0 : i32, i32, i32
  }
}

</mosaic_0001>

<llo_original>
// kernel: tpu_custom_call.1
$region0: #{tpu_custom_call.1}
  #allocation0 [shape = 'u32[]', space=smem, size = 0x4, offset = 0x4, fixed_abs, tag = 'smem constant byte address 0x4 - core index']
  #allocation1 [shape = 'u32[144,128]{1,0:T(1,128)}', space=vmem, size = 0x12000, scoped, tag = 'internal scratch']
  #allocation2 [shape = 'f32[8,32]{1,0:T(8,128)}', space=vmem, size = 0x1000, scoped, tag = 'scratch operand']
  %s0 = inlined_call_operand.vmem [shape: bf16[2,8,32], index: 0, kind: input, shape index: {}]
  %s1 = inlined_call_operand.vmem [shape: bf16[4,32,16], index: 1, kind: input, shape index: {}]
  %s2 = inlined_call_operand.vmem [shape: bf16[4,32,16], index: 2, kind: input, shape index: {}]
  %s3 = inlined_call_operand.vmem [shape: bf16[4,32,16], index: 3, kind: input, shape index: {}]
  %s4 = inlined_call_operand.vmem [shape: bf16[4,16,32], index: 4, kind: input, shape index: {}]
  %s5 = inlined_call_operand.vmem [shape: f32[1,32], index: 5, kind: input, shape index: {}]
  %s6 = inlined_call_operand.hbm [shape: f32[2,8,32], index: 6, kind: output, shape index: {}]
  %s7 = sld [smem:[#allocation0]]
  $region72: #{tpu_custom_call.1} parent=0
    _
  %s9 = ssub.s32 1, %s7
  %s10 = scalar_select 0, %s9, %s7
  $region1: #{tpu_custom_call.1} parent=0
    #allocation3 [shape = 'u8[8192]{0}', space=vmem, size = 0x2000, scoped, tag = 'output window, operand 0']
    #allocation4 [shape = 's32[2]{0}', space=sflag, size = 0x8, scoped, tag = 'scoped memory for tpu_custom_call.1']
    %11 = vsyncpa [#allocation4], 0
    %s12 = scalar_lea.sflag [#allocation4], 1
    %13 = vsyncpa %s12, 0
    loop: start=0, step=1, limit=4
    $region2: #{tpu_custom_call.1} parent=1 // loop_pre_header
      _
    $region3: #{tpu_custom_call.1} parent=1 // loop_header
      %s15 = sphi 0, %s19
      %p16 = scmp.ge.s32.totalorder %s15, 4
      %s22 = sphi 0, %s34
      %s23 = sphi 0, %s30
      %s24 = sphi 0, %s22
      %s25 = sphi 0, %s23
      %s26 = sphi 0, %s24
      %s27 = sphi 0, %s25
      %s37 = sphi 0, %s39
      %s40 = sphi 0, %s37
      %s41 = sphi 0, %s40
      %s57 = sphi 0, %s41
      %s63 = sphi 0, %s65
      %s66 = sphi 0, %s63
      %s67 = sphi 0, %s66
      %s83 = sphi 0, %s67
      %s89 = sphi 0, %s91
      %s92 = sphi 0, %s89
      %s93 = sphi 0, %s92
      %s109 = sphi 0, %s93
      %s115 = sphi 0, %s117
      %s118 = sphi 0, %s115
      %s119 = sphi 0, %s118
      %s135 = sphi 0, %s119
      %s141 = sphi 0, %s143
      %s144 = sphi 0, %s141
      %s145 = sphi 0, %s144
      %s161 = sphi 0, %s145
      %s165 = sphi 0, %s165
      %s167 = sphi 0, %s165
      %s168 = sphi 0, %s167
      %s182 = sphi 0, %s168
      %s188 = sphi 0, %s190
      %s191 = sphi 0, %s188
      %s192 = sphi 0, %s191
      %s208 = sphi 0, %s192
    $region4: #{tpu_custom_call.1} parent=1 // loop_header_branch
      %18 = sbr.rel (%p16) target = $region8
    $region5: #{tpu_custom_call.1} parent=1 // loop_body
      %s20 = ssub.s32 %s15, 1
      %s21 = ssub.s32 %s15, 2
      %s28 = sadd.s32 1, %s23
      %p29 = scmp.ge.s32.totalorder %s28, 1
      %s30 = scalar_select %p29, 0, %s28
      %s31 = sadd.s32 1, %s22
      %s32 = scalar_select %p29, %s31, %s22
      %p33 = scmp.ge.s32.totalorder %s32, 2
      %s34 = scalar_select %p33, 0, %s32
      %s35 = ssub.s32 %s22, %s34
      %p36 = scmp.eq.s32.totalorder %s35, 0
      %s38 = sadd.s32 %s37, 1
      %s39 = scalar_select %p36, %s37, %s38
      %p42 = pneg %p36
      %p43 = scmp.eq.s32.totalorder %s15, 1
      %p44 = por %p42, %p43
      %p45 = scmp.ne.s32.totalorder %s37, %s40
      %p46 = scmp.eq.s32.totalorder %s15, 0
      %p47 = por %p45, %p46
      %p48 = scmp.ne.s32.totalorder %s37, %s40
      %p49 = scmp.eq.s32.totalorder %s20, 1
      %p50 = por %p48, %p49
      %p51 = scmp.ne.s32.totalorder %s40, %s41
      %p52 = scmp.eq.s32.totalorder %s20, 0
      %p53 = por %p51, %p52
      %p54 = scmp.ne.s32.totalorder %s40, %s41
      %p55 = scmp.eq.s32.totalorder %s21, 1
      %p56 = por %p54, %p55
      %p58 = scmp.ne.s32.totalorder %s41, %s57
      %p59 = scmp.eq.s32.totalorder %s21, 0
      %p60 = por %p58, %p59
      %s61 = ssub.s32 %s23, %s30
      %p62 = scmp.eq.s32.totalorder %s61, 0
      %s64 = sadd.s32 %s63, 1
      %s65 = scalar_select %p62, %s63, %s64
      %p68 = pneg %p62
      %p69 = scmp.eq.s32.totalorder %s15, 1
      %p70 = por %p68, %p69
      %p71 = scmp.ne.s32.totalorder %s63, %s66
      %p72 = scmp.eq.s32.totalorder %s15, 0
      %p73 = por %p71, %p72
      %p74 = scmp.ne.s32.totalorder %s63, %s66
      %p75 = scmp.eq.s32.totalorder %s20, 1
      %p76 = por %p74, %p75
      %p77 = scmp.ne.s32.totalorder %s66, %s67
      %p78 = scmp.eq.s32.totalorder %s20, 0
      %p79 = por %p77, %p78
      %p80 = scmp.ne.s32.totalorder %s66, %s67
      %p81 = scmp.eq.s32.totalorder %s21, 1
      %p82 = por %p80, %p81
      %p84 = scmp.ne.s32.totalorder %s67, %s83
      %p85 = scmp.eq.s32.totalorder %s21, 0
      %p86 = por %p84, %p85
      %s87 = ssub.s32 %s23, %s30
      %p88 = scmp.eq.s32.totalorder %s87, 0
      %s90 = sadd.s32 %s89, 1
      %s91 = scalar_select %p88, %s89, %s90
      %p94 = pneg %p88
      %p95 = scmp.eq.s32.totalorder %s15, 1
      %p96 = por %p94, %p95
      %p97 = scmp.ne.s32.totalorder %s89, %s92
      %p98 = scmp.eq.s32.totalorder %s15, 0
      %p99 = por %p97, %p98
      %p100 = scmp.ne.s32.totalorder %s89, %s92
      %p101 = scmp.eq.s32.totalorder %s20, 1
      %p102 = por %p100, %p101
      %p103 = scmp.ne.s32.totalorder %s92, %s93
      %p104 = scmp.eq.s32.totalorder %s20, 0
      %p105 = por %p103, %p104
      %p106 = scmp.ne.s32.totalorder %s92, %s93
      %p107 = scmp.eq.s32.totalorder %s21, 1
      %p108 = por %p106, %p107
      %p110 = scmp.ne.s32.totalorder %s93, %s109
      %p111 = scmp.eq.s32.totalorder %s21, 0
      %p112 = por %p110, %p111
      %s113 = ssub.s32 %s23, %s30
      %p114 = scmp.eq.s32.totalorder %s113, 0
      %s116 = sadd.s32 %s115, 1
      %s117 = scalar_select %p114, %s115, %s116
      %p120 = pneg %p114
      %p121 = scmp.eq.s32.totalorder %s15, 1
      %p122 = por %p120, %p121
      %p123 = scmp.ne.s32.totalorder %s115, %s118
      %p124 = scmp.eq.s32.totalorder %s15, 0
      %p125 = por %p123, %p124
      %p126 = scmp.ne.s32.totalorder %s115, %s118
      %p127 = scmp.eq.s32.totalorder %s20, 1
      %p128 = por %p126, %p127
      %p129 = scmp.ne.s32.totalorder %s118, %s119
      %p130 = scmp.eq.s32.totalorder %s20, 0
      %p131 = por %p129, %p130
      %p132 = scmp.ne.s32.totalorder %s118, %s119
      %p133 = scmp.eq.s32.totalorder %s21, 1
      %p134 = por %p132, %p133
      %p136 = scmp.ne.s32.totalorder %s119, %s135
      %p137 = scmp.eq.s32.totalorder %s21, 0
      %p138 = por %p136, %p137
      %s139 = ssub.s32 %s23, %s30
      %p140 = scmp.eq.s32.totalorder %s139, 0
      %s142 = sadd.s32 %s141, 1
      %s143 = scalar_select %p140, %s141, %s142
      %p146 = pneg %p140
      %p147 = scmp.eq.s32.totalorder %s15, 1
      %p148 = por %p146, %p147
      %p149 = scmp.ne.s32.totalorder %s141, %s144
      %p150 = scmp.eq.s32.totalorder %s15, 0
      %p151 = por %p149, %p150
      %p152 = scmp.ne.s32.totalorder %s141, %s144
      %p153 = scmp.eq.s32.totalorder %s20, 1
      %p154 = por %p152, %p153
      %p155 = scmp.ne.s32.totalorder %s144, %s145
      %p156 = scmp.eq.s32.totalorder %s20, 0
      %p157 = por %p155, %p156
      %p158 = scmp.ne.s32.totalorder %s144, %s145
      %p159 = scmp.eq.s32.totalorder %s21, 1
      %p160 = por %p158, %p159
      %p162 = scmp.ne.s32.totalorder %s145, %s161
      %p163 = scmp.eq.s32.totalorder %s21, 0
      %p164 = por %p162, %p163
      %s166 = sadd.s32 %s165, 1
      %p169 = scmp.eq.s32.totalorder %s15, 1
      %p170 = scmp.ne.s32.totalorder %s165, %s167
      %p171 = scmp.eq.s32.totalorder %s15, 0
      %p172 = por %p170, %p171
      %p173 = scmp.ne.s32.totalorder %s165, %s167
      %p174 = scmp.eq.s32.totalorder %s20, 1
      %p175 = por %p173, %p174
      %p176 = scmp.ne.s32.totalorder %s167, %s168
      %p177 = scmp.eq.s32.totalorder %s20, 0
      %p178 = por %p176, %p177
      %p179 = scmp.ne.s32.totalorder %s167, %s168
      %p180 = scmp.eq.s32.totalorder %s21, 1
      %p181 = por %p179, %p180
      %p183 = scmp.ne.s32.totalorder %s168, %s182
      %p184 = scmp.eq.s32.totalorder %s21, 0
      %p185 = por %p183, %p184
      %s186 = ssub.s32 %s22, %s34
      %p187 = scmp.eq.s32.totalorder %s186, 0
      %s189 = sadd.s32 %s188, 1
      %s190 = scalar_select %p187, %s188, %s189
      %p193 = pneg %p187
      %p194 = scmp.eq.s32.totalorder %s15, 1
      %p195 = por %p193, %p194
      %p196 = scmp.ne.s32.totalorder %s188, %s191
      %p197 = scmp.eq.s32.totalorder %s15, 0
      %p198 = por %p196, %p197
      %p199 = scmp.ne.s32.totalorder %s188, %s191
      %p200 = scmp.eq.s32.totalorder %s20, 1
      %p201 = por %p199, %p200
      %p202 = scmp.ne.s32.totalorder %s191, %s192
      %p203 = scmp.eq.s32.totalorder %s20, 0
      %p204 = por %p202, %p203
      %p205 = scmp.ne.s32.totalorder %s191, %s192
      %p206 = scmp.eq.s32.totalorder %s21, 1
      %p207 = por %p205, %p206
      %p209 = scmp.ne.s32.totalorder %s192, %s208
      %p210 = scmp.eq.s32.totalorder %s21, 0
      %p211 = por %p209, %p210
      %p212 = scmp.le.s32.totalorder 1, %s15
      %p213 = scmp.lt.s32.totalorder %s15, 3
      %p214 = pnand %p212, %p213
      %p215 = pneg %p214
      // Predicated region
      $region9: #{tpu_custom_call.1} parent=5 // pred_check
        _
      $region10: #{tpu_custom_call.1} parent=5 // pred_check_branch
        %217 = sbr.rel (%p214) target = $region12
      $region11: #{tpu_custom_call.1} parent=5 // pred_region
        %s218 = ssub.s32 %s15, 1
        // Predicated region
        $region13: #{tpu_custom_call.1} parent=11 // pred_check
          %p219 = pneg %p79
        $region14: #{tpu_custom_call.1} parent=11 // pred_check_branch
          %221 = sbr.rel (%p219) target = $region16
        $region15: #{tpu_custom_call.1} parent=11 // pred_region
          %s222 = smul.u32 4, %s25
          %p223 = scmp.lt.s32.totalorder %s222, 3
          %s224 = scalar_select %p223, %s222, 3
          %s225 = smul.addr %s224, 4
          %s226 = smul.addr %s225, 4
          %s227 = scalar_lea.vmem %s1, %s226
          %s228 = smul.u32 4, %s25
        $region16: #{tpu_custom_call.1} parent=11 // pred_fallthru
          _
        // Predicated region
        $region17: #{tpu_custom_call.1} parent=11 // pred_check
          %p229 = pneg %p105
        $region18: #{tpu_custom_call.1} parent=11 // pred_check_branch
          %231 = sbr.rel (%p229) target = $region20
        $region19: #{tpu_custom_call.1} parent=11 // pred_region
          %s232 = smul.u32 4, %s25
          %p233 = scmp.lt.s32.totalorder %s232, 3
          %s234 = scalar_select %p233, %s232, 3
          %s235 = smul.addr %s234, 4
          %s236 = smul.addr %s235, 4
          %s237 = scalar_lea.vmem %s2, %s236
          %s238 = smul.u32 4, %s25
        $region20: #{tpu_custom_call.1} parent=11 // pred_fallthru
          _
        // Predicated region
        $region21: #{tpu_custom_call.1} parent=11 // pred_check
          %p239 = pneg %p131
        $region22: #{tpu_custom_call.1} parent=11 // pred_check_branch
          %241 = sbr.rel (%p239) target = $region24
        $region23: #{tpu_custom_call.1} parent=11 // pred_region
          %s242 = smul.u32 4, %s25
          %p243 = scmp.lt.s32.totalorder %s242, 3
          %s244 = scalar_select %p243, %s242, 3
          %s245 = smul.addr %s244, 4
          %s246 = smul.addr %s245, 4
          %s247 = scalar_lea.vmem %s3, %s246
          %s248 = smul.u32 4, %s25
        $region24: #{tpu_custom_call.1} parent=11 // pred_fallthru
          _
        // Predicated region
        $region25: #{tpu_custom_call.1} parent=11 // pred_check
          %p249 = pneg %p157
        $region26: #{tpu_custom_call.1} parent=11 // pred_check_branch
          %251 = sbr.rel (%p249) target = $region28
        $region27: #{tpu_custom_call.1} parent=11 // pred_region
          %s252 = smul.u32 4, %s25
          %p253 = scmp.lt.s32.totalorder %s252, 3
          %s254 = scalar_select %p253, %s252, 3
          %s255 = smul.addr %s254, 2
          %s256 = smul.addr %s255, 4
          %s257 = scalar_lea.vmem %s4, %s256
          %s258 = smul.u32 4, %s25
        $region28: #{tpu_custom_call.1} parent=11 // pred_fallthru
          _
        // Predicated region
        $region29: #{tpu_custom_call.1} parent=11 // pred_check
          %p259 = pneg %p178
        $region30: #{tpu_custom_call.1} parent=11 // pred_check_branch
          %261 = sbr.rel (%p259) target = $region32
        $region31: #{tpu_custom_call.1} parent=11 // pred_region
          _
        $region32: #{tpu_custom_call.1} parent=11 // pred_fallthru
          _
      $region12: #{tpu_custom_call.1} parent=5 // pred_fallthru
        _
      %p262 = scmp.lt.s32.totalorder %s15, 2
      // Predicated region
      $region33: #{tpu_custom_call.1} parent=5 // pred_check
        %p263 = pneg %p262
      $region34: #{tpu_custom_call.1} parent=5 // pred_check_branch
        %265 = sbr.rel (%p263) target = $region36
      $region35: #{tpu_custom_call.1} parent=5 // pred_region
        // Predicated region
        $region37: #{tpu_custom_call.1} parent=35 // pred_check
          %p266 = pneg %p47
        $region38: #{tpu_custom_call.1} parent=35 // pred_check_branch
          %268 = sbr.rel (%p266) target = $region40
        $region39: #{tpu_custom_call.1} parent=35 // pred_region
          %p269 = scmp.lt.s32.totalorder %s22, 1
          %s270 = scalar_select %p269, %s22, 1
          %s271 = smul.addr %s270, 4
          %s272 = scalar_lea.vmem %s0, %s271
        $region40: #{tpu_custom_call.1} parent=35 // pred_fallthru
          _
      $region36: #{tpu_custom_call.1} parent=5 // pred_fallthru
        _
      %p273 = scmp.le.s32.totalorder 1, %s15
      %p274 = scmp.lt.s32.totalorder %s15, 3
      %p275 = pnand %p273, %p274
      %p276 = pneg %p275
      // Predicated region
      $region41: #{tpu_custom_call.1} parent=5 // pred_check
        _
      $region42: #{tpu_custom_call.1} parent=5 // pred_check_branch
        %278 = sbr.rel (%p275) target = $region44
      $region43: #{tpu_custom_call.1} parent=5 // pred_region
        %s279 = ssub.s32 %s15, 1
        %p280 = scmp.lt.s32.totalorder %s24, 1
        %s281 = scalar_select %p280, %s24, 1
        %s282 = smul.addr %s281, 4
        %s283 = scalar_lea.vmem %s0, %s282
        %p284 = pneg %p53
        %p285 = pneg %p50
        %s286 = smul.u32 4, %s25
        %p287 = scmp.lt.s32.totalorder %s286, 3
        %s288 = scalar_select %p287, %s286, 3
        %s289 = smul.addr %s288, 4
        %s290 = smul.addr %s289, 4
        %s291 = scalar_lea.vmem %s1, %s290
        %p292 = pneg %p79
        %p293 = pneg %p76
        %s294 = smul.u32 4, %s25
        %p295 = scmp.lt.s32.totalorder %s294, 3
        %s296 = scalar_select %p295, %s294, 3
        %s297 = smul.addr %s296, 4
        %s298 = smul.addr %s297, 4
        %s299 = scalar_lea.vmem %s2, %s298
        %p300 = pneg %p105
        %p301 = pneg %p102
        %s302 = smul.u32 4, %s25
        %p303 = scmp.lt.s32.totalorder %s302, 3
        %s304 = scalar_select %p303, %s302, 3
        %s305 = smul.addr %s304, 4
        %s306 = smul.addr %s305, 4
        %s307 = scalar_lea.vmem %s3, %s306
        %p308 = pneg %p131
        %p309 = pneg %p128
        %s310 = smul.u32 4, %s25
        %p311 = scmp.lt.s32.totalorder %s310, 3
        %s312 = scalar_select %p311, %s310, 3
        %s313 = smul.addr %s312, 2
        %s314 = smul.addr %s313, 4
        %s315 = scalar_lea.vmem %s4, %s314
        %p316 = pneg %p157
        %p317 = pneg %p154
        %p318 = pneg %p178
        %p319 = pneg %p175
        %p320 = pneg %p204
        %p321 = pneg %p201
        %s322 = sand.u32 %s191, 1
        %s323 = scalar_lea.sflag [#allocation4], %s322
        %s324 = sand.u32 %s191, 1
        %s325 = smul.addr %s324, 8
        %s326 = scalar_lea.vmem [#allocation3], %s325
        %p327 = scmp.lt.s32.totalorder %s24, 1
        %s328 = scalar_select %p327, %s24, 1
        %s329 = smul.addr %s328, 4
        %s330 = scalar_lea.vmem %s0, %s329
        %s331 = smul.u32 4, %s25
        %p332 = scmp.lt.s32.totalorder %s331, 3
        %s333 = scalar_select %p332, %s331, 3
        %s334 = smul.addr %s333, 4
        %s335 = smul.addr %s334, 4
        %s336 = scalar_lea.vmem %s1, %s335
        %s337 = smul.u32 4, %s25
        %s338 = smul.u32 4, %s25
        %p339 = scmp.lt.s32.totalorder %s338, 3
        %s340 = scalar_select %p339, %s338, 3
        %s341 = smul.addr %s340, 4
        %s342 = smul.addr %s341, 4
        %s343 = scalar_lea.vmem %s2, %s342
        %s344 = smul.u32 4, %s25
        %s345 = smul.u32 4, %s25
        %p346 = scmp.lt.s32.totalorder %s345, 3
        %s347 = scalar_select %p346, %s345, 3
        %s348 = smul.addr %s347, 4
        %s349 = smul.addr %s348, 4
        %s350 = scalar_lea.vmem %s3, %s349
        %s351 = smul.u32 4, %s25
        %s352 = smul.u32 4, %s25
        %p353 = scmp.lt.s32.totalorder %s352, 3
        %s354 = scalar_select %p353, %s352, 3
        %s355 = smul.addr %s354, 2
        %s356 = smul.addr %s355, 4
        %s357 = scalar_lea.vmem %s4, %s356
        %s358 = smul.u32 4, %s25
        %v360 = vld [vmem:[%s330] sm:$0xf]
        %vm361 = vcmask 261120
        %362 = vst.msk [vmem:[#allocation2] sm:$0xff] %vm361, 0.0
        loop: start=0, step=1, limit=4
        $region45: #{tpu_custom_call.1} parent=43 // loop_pre_header
          _
        $region46: #{tpu_custom_call.1} parent=43 // loop_header
          %s364 = sphi 0, %s368
          %p365 = scmp.ge.s32.totalorder %s364, 4
        $region47: #{tpu_custom_call.1} parent=43 // loop_header_branch
          %367 = sbr.rel (%p365) target = $region51
        $region48: #{tpu_custom_call.1} parent=43 // loop_body
          %s369 = smul.u32 %s364, 4
          %s370 = smul.addr %s369, 4
          %s371 = scalar_lea.vmem %s336, %s370
          %v372 = vld [vmem:[%s371] sm:$0xf]
          %v373 = vld [vmem:[%s371 + $0x4] sm:$0xf]
          %v374 = vld [vmem:[%s371 + $0x8] sm:$0xf]
          %v375 = vld [vmem:[%s371 + $0xc] sm:$0xf]
          %v380 = vunpack.c.l.b16 %v372
          %v381 = vunpack.c.l.b16 %v373
          %v382 = vunpack.c.l.b16 %v374
          %v383 = vunpack.c.l.b16 %v375
          %v384 = vpack.c.b16 %v381, %v380
          %v385 = vpack.c.b16 %v383, %v382
          %v389 = vsel %vm361, %v360, 0
          %391 = vmatprep.subr.bf16.mxu0 0
          %392 = vmatpush1.bf16.msra.mxu0 %v384
          %393 = vmatprep.subr.bf16.mxu0 0
          %394 = vmatpush1.bf16.msra.mxu0 %v385
          %395 = vmatprep.subr.bf16.mxu0 0
          %396 = vmatpush1.bf16.msra.mxu0 0
          %397 = vmatprep.subr.bf16.mxu0 0
          %398 = vmatpush1.bf16.msra.mxu0 0
          %399 = vmatprep.subr.bf16.mxu0 0
          %400 = vmatpush1.bf16.msra.mxu0 0
          %401 = vmatprep.subr.bf16.mxu0 0
          %402 = vmatpush1.bf16.msra.mxu0 0
          %403 = vmatprep.subr.bf16.mxu0 0
          %404 = vmatpush1.bf16.msra.mxu0 0
          %405 = vmatprep.subr.bf16.mxu0 0
          %406 = vmatpush1.bf16.msra.mxu0 0
          %407 = vmatprep.subr.bf16.mxu0 0
          %408 = vmatpush1.bf16.msra.mxu0 0
          %409 = vmatprep.subr.bf16.mxu0 0
          %410 = vmatpush1.bf16.msra.mxu0 0
          %411 = vmatprep.subr.bf16.mxu0 0
          %412 = vmatpush1.bf16.msra.mxu0 0
          %413 = vmatprep.subr.bf16.mxu0 0
          %414 = vmatpush1.bf16.msra.mxu0 0
          %415 = vmatprep.subr.bf16.mxu0 0
          %416 = vmatpush1.bf16.msra.mxu0 0
          %417 = vmatprep.subr.bf16.mxu0 0
          %418 = vmatpush1.bf16.msra.mxu0 0
          %419 = vmatprep.subr.bf16.mxu0 0
          %420 = vmatpush1.bf16.msra.mxu0 0
          %421 = vmatprep.subr.bf16.mxu0 0
          %422 = vmatpush1.bf16.msra.mxu0 0
          %423 = vmatprep.mubr.bf16.mxu0 0
          %424 = vmatmul.mubr.bf16.gmra.mrb[0].mxu0 %v389
          %v425 = vpop.f32.mrb[0].mxu0
          %v426 = vadd.f32 0.0, %v425
          %v427 = vpop.f32.mrb[0].mxu0
          %v428 = vpop.f32.mrb[0].mxu0
          %v429 = vpop.f32.mrb[0].mxu0
          %430 = vdwg.mxu0
          %s431 = smul.addr %s369, 4
          %s432 = scalar_lea.vmem %s343, %s431
          %v433 = vld [vmem:[%s432] sm:$0xf]
          %v434 = vld [vmem:[%s432 + $0x4] sm:$0xf]
          %v435 = vld [vmem:[%s432 + $0x8] sm:$0xf]
          %v436 = vld [vmem:[%s432 + $0xc] sm:$0xf]
          %v441 = vunpack.c.l.b16 %v433
          %v442 = vunpack.c.l.b16 %v434
          %v443 = vunpack.c.l.b16 %v435
          %v444 = vunpack.c.l.b16 %v436
          %v445 = vpack.c.b16 %v442, %v441
          %v446 = vpack.c.b16 %v444, %v443
          %449 = vmatprep.subr.bf16.mxu0 0
          %450 = vmatpush1.bf16.msra.mxu0 %v445
          %451 = vmatprep.subr.bf16.mxu0 0
          %452 = vmatpush1.bf16.msra.mxu0 %v446
          %453 = vmatprep.subr.bf16.mxu0 0
          %454 = vmatpush1.bf16.msra.mxu0 0
          %455 = vmatprep.subr.bf16.mxu0 0
          %456 = vmatpush1.bf16.msra.mxu0 0
          %457 = vmatprep.subr.bf16.mxu0 0
          %458 = vmatpush1.bf16.msra.mxu0 0
          %459 = vmatprep.subr.bf16.mxu0 0
          %460 = vmatpush1.bf16.msra.mxu0 0
          %461 = vmatprep.subr.bf16.mxu0 0
          %462 = vmatpush1.bf16.msra.mxu0 0
          %463 = vmatprep.subr.bf16.mxu0 0
          %464 = vmatpush1.bf16.msra.mxu0 0
          %465 = vmatprep.subr.bf16.mxu0 0
          %466 = vmatpush1.bf16.msra.mxu0 0
          %467 = vmatprep.subr.bf16.mxu0 0
          %468 = vmatpush1.bf16.msra.mxu0 0
          %469 = vmatprep.subr.bf16.mxu0 0
          %470 = vmatpush1.bf16.msra.mxu0 0
          %471 = vmatprep.subr.bf16.mxu0 0
          %472 = vmatpush1.bf16.msra.mxu0 0
          %473 = vmatprep.subr.bf16.mxu0 0
          %474 = vmatpush1.bf16.msra.mxu0 0
          %475 = vmatprep.subr.bf16.mxu0 0
          %476 = vmatpush1.bf16.msra.mxu0 0
          %477 = vmatprep.subr.bf16.mxu0 0
          %478 = vmatpush1.bf16.msra.mxu0 0
          %479 = vmatprep.subr.bf16.mxu0 0
          %480 = vmatpush1.bf16.msra.mxu0 0
          %481 = vmatprep.mubr.bf16.mxu0 0
          %482 = vmatmul.mubr.bf16.gmra.mrb[0].mxu0 %v389
          %v483 = vpop.f32.mrb[0].mxu0
          %v484 = vadd.f32 0.0, %v483
          %v485 = vpop.f32.mrb[0].mxu0
          %v486 = vpop.f32.mrb[0].mxu0
          %v487 = vpop.f32.mrb[0].mxu0
          %488 = vdwg.mxu0
          %s489 = smul.addr %s369, 4
          %s490 = scalar_lea.vmem %s350, %s489
          %v491 = vld [vmem:[%s490] sm:$0xf]
          %v492 = vld [vmem:[%s490 + $0x4] sm:$0xf]
          %v493 = vld [vmem:[%s490 + $0x8] sm:$0xf]
          %v494 = vld [vmem:[%s490 + $0xc] sm:$0xf]
          %v499 = vunpack.c.l.b16 %v491
          %v500 = vunpack.c.l.b16 %v492
          %v501 = vunpack.c.l.b16 %v493
          %v502 = vunpack.c.l.b16 %v494
          %v503 = vpack.c.b16 %v500, %v499
          %v504 = vpack.c.b16 %v502, %v501
          %507 = vmatprep.subr.bf16.mxu0 0
          %508 = vmatpush1.bf16.msra.mxu0 %v503
          %509 = vmatprep.subr.bf16.mxu0 0
          %510 = vmatpush1.bf16.msra.mxu0 %v504
          %511 = vmatprep.subr.bf16.mxu0 0
          %512 = vmatpush1.bf16.msra.mxu0 0
          %513 = vmatprep.subr.bf16.mxu0 0
          %514 = vmatpush1.bf16.msra.mxu0 0
          %515 = vmatprep.subr.bf16.mxu0 0
          %516 = vmatpush1.bf16.msra.mxu0 0
          %517 = vmatprep.subr.bf16.mxu0 0
          %518 = vmatpush1.bf16.msra.mxu0 0
          %519 = vmatprep.subr.bf16.mxu0 0
          %520 = vmatpush1.bf16.msra.mxu0 0
          %521 = vmatprep.subr.bf16.mxu0 0
          %522 = vmatpush1.bf16.msra.mxu0 0
          %523 = vmatprep.subr.bf16.mxu0 0
          %524 = vmatpush1.bf16.msra.mxu0 0
          %525 = vmatprep.subr.bf16.mxu0 0
          %526 = vmatpush1.bf16.msra.mxu0 0
          %527 = vmatprep.subr.bf16.mxu0 0
          %528 = vmatpush1.bf16.msra.mxu0 0
          %529 = vmatprep.subr.bf16.mxu0 0
          %530 = vmatpush1.bf16.msra.mxu0 0
          %531 = vmatprep.subr.bf16.mxu0 0
          %532 = vmatpush1.bf16.msra.mxu0 0
          %533 = vmatprep.subr.bf16.mxu0 0
          %534 = vmatpush1.bf16.msra.mxu0 0
          %535 = vmatprep.subr.bf16.mxu0 0
          %536 = vmatpush1.bf16.msra.mxu0 0
          %537 = vmatprep.subr.bf16.mxu0 0
          %538 = vmatpush1.bf16.msra.mxu0 0
          %539 = vmatprep.mubr.bf16.mxu0 0
          %540 = vmatmul.mubr.bf16.gmra.mrb[0].mxu0 %v389
          %v541 = vpop.f32.mrb[0].mxu0
          %v542 = vadd.f32 0.0, %v541
          %v543 = vpop.f32.mrb[0].mxu0
          %v544 = vpop.f32.mrb[0].mxu0
          %v545 = vpop.f32.mrb[0].mxu0
          %546 = vdwg.mxu0
          %v547 = vmul.f32 %v426, 0.25
          %v548 = vpack.c.bf16 %v547, %v547
          %v549 = vpack.c.bf16 %v484, %v484
          %v550 = vpack.c.bf16 %v542, %v542
          %vm551 = vcmask 130048
          %v553 = vsel %vm551, %v548, 0
          %v556 = vsel %vm551, %v549, 0
          %558 = vmatprep.subr.bf16.mxu0 0
          %559 = vmatpush1.bf16.xpose.msra.mxu0 %v556
          %560 = vmatprep.subr.bf16.mxu0 0
          %561 = vmatpush1.bf16.xpose.msra.mxu0 0
          %562 = vmatprep.subr.bf16.mxu0 0
          %563 = vmatpush1.bf16.xpose.msra.mxu0 0
          %564 = vmatprep.subr.bf16.mxu0 0
          %565 = vmatpush1.bf16.xpose.msra.mxu0 0
          %566 = vmatprep.subr.bf16.mxu0 0
          %567 = vmatpush1.bf16.xpose.msra.mxu0 0
          %568 = vmatprep.subr.bf16.mxu0 0
          %569 = vmatpush1.bf16.xpose.msra.mxu0 0
          %570 = vmatprep.subr.bf16.mxu0 0
          %571 = vmatpush1.bf16.xpose.msra.mxu0 0
          %572 = vmatprep.subr.bf16.mxu0 0
          %573 = vmatpush1.bf16.xpose.msra.mxu0 0
          %574 = vmatprep.subr.bf16.mxu0 0
          %575 = vmatpush1.bf16.xpose.msra.mxu0 0
          %576 = vmatprep.subr.bf16.mxu0 0
          %577 = vmatpush1.bf16.xpose.msra.mxu0 0
          %578 = vmatprep.subr.bf16.mxu0 0
          %579 = vmatpush1.bf16.xpose.msra.mxu0 0
          %580 = vmatprep.subr.bf16.mxu0 0
          %581 = vmatpush1.bf16.xpose.msra.mxu0 0
          %582 = vmatprep.subr.bf16.mxu0 0
          %583 = vmatpush1.bf16.xpose.msra.mxu0 0
          %584 = vmatprep.subr.bf16.mxu0 0
          %585 = vmatpush1.bf16.xpose.msra.mxu0 0
          %586 = vmatprep.subr.bf16.mxu0 0
          %587 = vmatpush1.bf16.xpose.msra.mxu0 0
          %588 = vmatprep.subr.bf16.mxu0 0
          %589 = vmatpush1.bf16.xpose.msra.mxu0 0
          %590 = vmatprep.mubr.bf16.mxu0 0
          %591 = vmatmul.mubr.bf16.gmra.mrb[0].mxu0 %v553
          %v592 = vpop.f32.mrb[0].mxu0
          %v593 = vadd.f32 0.0, %v592
          %v594 = vpop.f32.mrb[0].mxu0
          %v595 = vpop.f32.mrb[0].mxu0
          %v596 = vpop.f32.mrb[0].mxu0
          %597 = vdwg.mxu0
          %vm598 = vcmask 64512
          %v599 = vsel %vm598, %v593, -inf
          %600 = vmax.xlane.f32.xlu0 %v599
          %v601 = vpop.xlane.xlu0 %600
          %v602 = vsub.f32 %v593, %v601
          %v603 = vmul.f32 %v602, 1.442695
          %v604 = vpow.pop %v603
          %v605 = vsel %vm598, %v604, 0.0
          %606 = vadd.xlane.f32.xlu0 %v605
          %v607 = vpop.xlane.xlu0 %606
          %v608 = vrcp.pop %v607
          %v609 = vpack.c.bf16 %v604, %v604
          %v611 = vsel %vm598, %v609, 0
          %vm613 = vcmask 1043456
          %v615 = vsel %vm613, %v550, 0
          %617 = vmatprep.subr.bf16.mxu0 0
          %618 = vmatpush1.bf16.msra.mxu0 %v615
          %619 = vmatprep.subr.bf16.mxu0 0
          %620 = vmatpush1.bf16.msra.mxu0 0
          %621 = vmatprep.subr.bf16.mxu0 0
          %622 = vmatpush1.bf16.msra.mxu0 0
          %623 = vmatprep.subr.bf16.mxu0 0
          %624 = vmatpush1.bf16.msra.mxu0 0
          %625 = vmatprep.subr.bf16.mxu0 0
          %626 = vmatpush1.bf16.msra.mxu0 0
          %627 = vmatprep.subr.bf16.mxu0 0
          %628 = vmatpush1.bf16.msra.mxu0 0
          %629 = vmatprep.subr.bf16.mxu0 0
          %630 = vmatpush1.bf16.msra.mxu0 0
          %631 = vmatprep.subr.bf16.mxu0 0
          %632 = vmatpush1.bf16.msra.mxu0 0
          %633 = vmatprep.subr.bf16.mxu0 0
          %634 = vmatpush1.bf16.msra.mxu0 0
          %635 = vmatprep.subr.bf16.mxu0 0
          %636 = vmatpush1.bf16.msra.mxu0 0
          %637 = vmatprep.subr.bf16.mxu0 0
          %638 = vmatpush1.bf16.msra.mxu0 0
          %639 = vmatprep.subr.bf16.mxu0 0
          %640 = vmatpush1.bf16.msra.mxu0 0
          %641 = vmatprep.subr.bf16.mxu0 0
          %642 = vmatpush1.bf16.msra.mxu0 0
          %643 = vmatprep.subr.bf16.mxu0 0
          %644 = vmatpush1.bf16.msra.mxu0 0
          %645 = vmatprep.subr.bf16.mxu0 0
          %646 = vmatpush1.bf16.msra.mxu0 0
          %647 = vmatprep.subr.bf16.mxu0 0
          %648 = vmatpush1.bf16.msra.mxu0 0
          %649 = vmatprep.mubr.bf16.mxu0 0
          %650 = vmatmul.mubr.bf16.gmra.mrb[0].mxu0 %v611
          %v651 = vpop.f32.mrb[0].mxu0
          %v652 = vadd.f32 0.0, %v651
          %v653 = vpop.f32.mrb[0].mxu0
          %v654 = vpop.f32.mrb[0].mxu0
          %v655 = vpop.f32.mrb[0].mxu0
          %656 = vdwg.mxu0
          %v657 = vmul.f32 %v652, %v608
          %v658 = vld [vmem:[#allocation2] sm:$0xff]
          %v659 = vpack.c.bf16 %v657, %v657
          %s660 = smul.u32 %s364, 2
          %s661 = smul.addr %s660, 4
          %s662 = scalar_lea.vmem %s357, %s661
          %v663 = vld [vmem:[%s662] sm:$0xf]
          %v664 = vld [vmem:[%s662 + $0x4] sm:$0xf]
          %v667 = vunpack.c.l.b16 %v663
          %v668 = vunpack.c.l.b16 %v664
          %v669 = vpack.c.b16 %v668, %v667
          %v672 = vsel %vm551, %v659, 0
          %674 = vmatprep.subr.bf16.mxu0 0
          %675 = vmatpush1.bf16.msra.mxu0 %v669
          %676 = vmatprep.subr.bf16.mxu0 0
          %677 = vmatpush1.bf16.msra.mxu0 0
          %678 = vmatprep.subr.bf16.mxu0 0
          %679 = vmatpush1.bf16.msra.mxu0 0
          %680 = vmatprep.subr.bf16.mxu0 0
          %681 = vmatpush1.bf16.msra.mxu0 0
          %682 = vmatprep.subr.bf16.mxu0 0
          %683 = vmatpush1.bf16.msra.mxu0 0
          %684 = vmatprep.subr.bf16.mxu0 0
          %685 = vmatpush1.bf16.msra.mxu0 0
          %686 = vmatprep.subr.bf16.mxu0 0
          %687 = vmatpush1.bf16.msra.mxu0 0
          %688 = vmatprep.subr.bf16.mxu0 0
          %689 = vmatpush1.bf16.msra.mxu0 0
          %690 = vmatprep.subr.bf16.mxu0 0
          %691 = vmatpush1.bf16.msra.mxu0 0
          %692 = vmatprep.subr.bf16.mxu0 0
          %693 = vmatpush1.bf16.msra.mxu0 0
          %694 = vmatprep.subr.bf16.mxu0 0
          %695 = vmatpush1.bf16.msra.mxu0 0
          %696 = vmatprep.subr.bf16.mxu0 0
          %697 = vmatpush1.bf16.msra.mxu0 0
          %698 = vmatprep.subr.bf16.mxu0 0
          %699 = vmatpush1.bf16.msra.mxu0 0
          %700 = vmatprep.subr.bf16.mxu0 0
          %701 = vmatpush1.bf16.msra.mxu0 0
          %702 = vmatprep.subr.bf16.mxu0 0
          %703 = vmatpush1.bf16.msra.mxu0 0
          %704 = vmatprep.subr.bf16.mxu0 0
          %705 = vmatpush1.bf16.msra.mxu0 0
          %706 = vmatprep.mubr.bf16.mxu0 0
          %707 = vmatmul.mubr.bf16.gmra.mrb[0].mxu0 %v672
          %v708 = vpop.f32.mrb[0].mxu0
          %v709 = vadd.f32 0.0, %v708
          %v710 = vpop.f32.mrb[0].mxu0
          %v711 = vpop.f32.mrb[0].mxu0
          %v712 = vpop.f32.mrb[0].mxu0
          %713 = vdwg.mxu0
          %v714 = vadd.f32 %v658, %v709
          %715 = vst.msk [vmem:[#allocation2] sm:$0xff] %vm361, %v714
        $region49: #{tpu_custom_call.1} parent=43 // loop_footer
          %s368 = sadd.s32 1, %s364
        $region50: #{tpu_custom_call.1} parent=43 // loop_footer_branch
          %363 = sbr.rel target = $region46
        $region51: #{tpu_custom_call.1} parent=43 // loop_exit
          _
        %p716 = scmp.eq.s32.totalorder %s25, 0
        // Predicated region
        $region52: #{tpu_custom_call.1} parent=43 // pred_check
          %p717 = pneg %p716
        $region53: #{tpu_custom_call.1} parent=43 // pred_check_branch
          %719 = sbr.rel (%p717) target = $region55
        $region54: #{tpu_custom_call.1} parent=43 // pred_region
          %v720 = vld [vmem:[#allocation2] sm:$0xff]
          %v721 = vld [vmem:[%s5] sm:$0x1]
          %v723 = vlaneseq
          %v724 = vshrl.u32 %v723, 7
          %v725 = vsub.s32 0, %v724
          %v726 = vrot.slane %v721, %v725
          %v728 = vadd.f32 %v720, %v726
          %729 = vst.msk [vmem:[%s326] sm:$0xff] %vm361, %v728
        $region55: #{tpu_custom_call.1} parent=43 // pred_fallthru
          _
        %p730 = scmp.gt.s32.totalorder %s25, 0
        // Predicated region
        $region56: #{tpu_custom_call.1} parent=43 // pred_check
          %p731 = pneg %p730
        $region57: #{tpu_custom_call.1} parent=43 // pred_check_branch
          %733 = sbr.rel (%p731) target = $region59
        $region58: #{tpu_custom_call.1} parent=43 // pred_region
          %v734 = vld [vmem:[#allocation2] sm:$0xff]
          %735 = vst.msk [vmem:[%s326] sm:$0xff] %vm361, %v734
        $region59: #{tpu_custom_call.1} parent=43 // pred_fallthru
          _
        %s736 = sand.u32 %s191, 1
        %s737 = scalar_lea.sflag [#allocation4], %s736
        %s738 = sand.u32 %s191, 1
        %s739 = smul.addr %s738, 8
        %s740 = scalar_lea.vmem [#allocation3], %s739
        // Predicated region
        $region60: #{tpu_custom_call.1} parent=43 // pred_check
          %p741 = pneg %p201
        $region61: #{tpu_custom_call.1} parent=43 // pred_check_branch
          %743 = sbr.rel (%p741) target = $region63
        $region62: #{tpu_custom_call.1} parent=43 // pred_region
          %s745 = ssub.s32 128, 128
          %746 = vsyncadd %s737, %s745
          %s747 = smul.addr %s24, 128
          %s748 = scalar_lea.hbm %s6, %s747
          %s750 = sshll.u32 %s740, 4
          %s751 = int_to_ptr.vmem [resolvable:$true] %s750
          %753 = dma.vmem_to_hbm [thread:$0]  %s751, 128, %s748, %s737
        $region63: #{tpu_custom_call.1} parent=43 // pred_fallthru
          _
      $region44: #{tpu_custom_call.1} parent=5 // pred_fallthru
        _
      %p754 = scmp.le.s32.totalorder 2, %s15
      // Predicated region
      $region64: #{tpu_custom_call.1} parent=5 // pred_check
        %p755 = pneg %p754
      $region65: #{tpu_custom_call.1} parent=5 // pred_check_branch
        %757 = sbr.rel (%p755) target = $region67
      $region66: #{tpu_custom_call.1} parent=5 // pred_region
        %s758 = ssub.s32 %s15, 2
        // Predicated region
        $region68: #{tpu_custom_call.1} parent=66 // pred_check
          %p759 = pneg %p207
        $region69: #{tpu_custom_call.1} parent=66 // pred_check_branch
          %761 = sbr.rel (%p759) target = $region71
        $region70: #{tpu_custom_call.1} parent=66 // pred_region
          %s762 = sand.u32 %s192, 1
          %s763 = scalar_lea.sflag [#allocation4], %s762
          %s764 = sand.u32 %s192, 1
          %s765 = smul.addr %s764, 8
          %s766 = scalar_lea.vmem [#allocation3], %s765
          %767 = dma.done %s763, 128
        $region71: #{tpu_custom_call.1} parent=66 // pred_fallthru
          _
      $region67: #{tpu_custom_call.1} parent=5 // pred_fallthru
        _
    $region6: #{tpu_custom_call.1} parent=1 // loop_footer
      %s19 = sadd.s32 1, %s15
    $region7: #{tpu_custom_call.1} parent=1 // loop_footer_branch
      %14 = sbr.rel target = $region3
    $region8: #{tpu_custom_call.1} parent=1 // loop_exit
      _
    %768 = vsyncpa [#allocation4], 1
    %s769 = scalar_lea.sflag [#allocation4], 1
    %770 = vsyncpa %s769, 1

</llo_original>
